<compile_context>
chip_gen: v5e
topology: v5e:2x2
jax: 0.10.0
libtpu: 0.0.40
codegen_flags: <defaults>
</compile_context>

<pallas_src>
import jax
import jax.numpy as jnp
from jax import lax
from jax.experimental import pallas as pl
from jax.experimental.pallas import tpu as pltpu  # noqa: F401  (TPU backend assumed)

KH = KW = 3        # Conv2d(8, 32, 3, padding=1)
_LANE_PAD = 128    # zero-extension of the flattened spatial (lane) axis;
                   # 128 keeps the in-kernel concat lane-aligned (only +-(W+1) needed).


def _make_loop_kernel(N, Cin, Cout, H, W):
    HW = H * W
    NHW = N * HW
    taps = [(dh, dw) for dh in (-1, 0, 1) for dw in (-1, 0, 1)]  # == (kh-1, kw-1)

    def kernel(x_ref, w_ref, b_ref, y_ref, o_ref):
        # x_ref: (N, Cin, H*W)  f32    NCHW with H,W flattened (lane dim = H*W)
        # w_ref: (Cout, 9*Cin)  bf16   tap-major im2col weight (pre-cast in wrapper)
        # b_ref: (Cout, 1)      f32
        # y_ref: (N, Cout, H*W) f32    residual (HBM buffer aliased with o_ref)
        # o_ref: (N, Cout, H*W) f32
        # ---- fold the batch into the lane axis: (Cin, N*H*W), lane-dense -----
        x_all = jnp.concatenate([x_ref[n] for n in range(N)], axis=1)
        # ---- conv padding fused into the kernel: aligned zero extension ------
        zpad = jnp.zeros((Cin, _LANE_PAD), jnp.float32)
        xz = jnp.concatenate([zpad, x_all, zpad], axis=1)  # (Cin, NHW + 2*PAD)

        # Per-lane (h, w) coordinates of each flattened output position.
        # Done in f32 (exact for NHW << 2^24); avoids integer div/rem lowering.
        p = lax.broadcasted_iota(jnp.int32, (1, NHW), 1).astype(jnp.float32)
        hw = p - HW * jnp.floor(p / HW)
        h = jnp.floor(hw / W)
        w = hw - W * h

        # Boundary masks, computed ONCE and shared by all taps (4 compares total).
        mh = {-1: (h >= 1.0).astype(jnp.float32),
              1: (h <= float(H - 2)).astype(jnp.float32)}
        mw = {-1: (w >= 1.0).astype(jnp.float32),
              1: (w <= float(W - 2)).astype(jnp.float32)}

        # ---- in-register im2col: 9 shifted + masked taps -> (9*Cin, NHW) -----
        # f32 pieces of 8 sublanes each stay tile-aligned for the sublane concat;
        # a single cast to bf16 happens on the finished (72, NHW) slab below.
        cols = []
        for dh, dw in taps:
            s = dh * W + dw
            t = xz[:, _LANE_PAD + s:_LANE_PAD + s + NHW]     # (Cin, NHW)
            if dh != 0 and dw != 0:
                t = t * (mh[dh] * mw[dw])                    # zero the halo taps
            elif dh != 0:
                t = t * mh[dh]
            elif dw != 0:
                t = t * mw[dw]
            cols.append(t)
        xcol = jnp.concatenate(cols, axis=0)                 # (9*Cin, NHW) f32

        # ---- single K=72 MXU matmul: bf16 operands, f32 accumulation ---------
        acc = jnp.dot(w_ref[...],
                      xcol.astype(jnp.bfloat16),
                      preferred_element_type=jnp.float32)    # (Cout, NHW) f32

        # ---- fused bias + residual add, lane-dense stores in NCHW order ------
        bias = b_ref[...]                                    # (Cout, 1), lane-broadcast
        for n in range(N):
            o_ref[n] = (acc[:, n * HW:(n + 1) * HW] + bias + y_ref[n]).astype(o_ref.dtype)

    return kernel


@jax.jit
def loop_forward(x_nchw, y_nchw, weight, bias):
    """Equivalent of Loop.forward: Conv2d(8, 32, 3, padding=1)(x) + y (NCHW)."""
    N, Cin, H, W = x_nchw.shape
    Cout = weight.shape[0]
    HW = H * W

    # Free reshapes only (contiguous NCHW -> (N, C, H*W)); weight/bias are tiny.
    x3 = x_nchw.reshape(N, Cin, HW)
    y3 = y_nchw.reshape(N, Cout, HW)
    # PyTorch (Cout, Cin, KH, KW) -> tap-major (Cout, KH*KW*Cin), pre-cast to
    # bf16 here so the cast fuses with this tiny transpose outside the kernel.
    w2d = (jnp.transpose(weight, (0, 2, 3, 1))
              .reshape(Cout, KH * KW * Cin)
              .astype(jnp.bfloat16))
    b2 = bias.reshape(Cout, 1)

    out3 = pl.pallas_call(
        _make_loop_kernel(N, Cin, Cout, H, W),
        out_shape=jax.ShapeDtypeStruct((N, Cout, HW), x_nchw.dtype),
        # Whole problem (< 300 KB) lives in VMEM: single invocation, no grid.
        # Default (omitted) specs = whole arrays in VMEM.
        input_output_aliases={3: 0},   # reuse y's HBM buffer for the output
    )(x3, w2d, b2, y3)
    return out3.reshape(N, Cout, H, W)


if __name__ == "__main__":
    key = jax.random.PRNGKey(0)
    k_x, k_y, k_w, k_b = jax.random.split(key, 4)

    N, Cin, Cout, H, W = 2, 8, 32, 16, 16
    x = jax.random.normal(k_x, (N, Cin, H, W), jnp.float32)
    y = jax.random.normal(k_y, (N, Cout, H, W), jnp.float32)

    # Deterministic parameters (shapes of nn.Conv2d(8, 32, 3, padding=1)).
    weight = 0.1 * jax.random.normal(k_w, (Cout, Cin, KH, KW), jnp.float32)
    bias = 0.1 * jax.random.normal(k_b, (Cout,), jnp.float32)

    out = jax.block_until_ready(loop_forward(x, y, weight, bias))
    assert out.shape == (N, Cout, H, W)

    def conv_ref(xx, ww):
        return jax.lax.conv_general_dilated(
            xx, ww, (1, 1), ((1, 1), (1, 1)),
            dimension_numbers=("NCHW", "OIHW", "NCHW"))

    # Exact f32 reference: tolerance relaxed because the kernel uses bf16 MXU
    # operands (f32 accumulation), as is standard on v5e/v6e/v7x.
    ref_exact = conv_ref(x, weight) + bias[None, :, None, None] + y
    assert jnp.allclose(out, ref_exact, atol=5e-2, rtol=5e-2)

    # Tight check against a reference with the same bf16 operand rounding:
    # remaining difference is only f32 accumulation order (~1e-5).
    x_q = x.astype(jnp.bfloat16).astype(jnp.float32)
    w_q = weight.astype(jnp.bfloat16).astype(jnp.float32)
    ref_bf16 = conv_ref(x_q, w_q) + bias[None, :, None, None] + y
    assert jnp.allclose(out, ref_bf16, atol=2e-3, rtol=2e-3)

    print("KERNEL_OK")
</pallas_src>

<mosaic_0001>
module attributes {stable_mosaic.version = 11 : i64} {
  func.func @kernel(%arg0: memref<2x8x256xf32, #tpu.memory_space<vmem>>, %arg1: memref<32x72xbf16, #tpu.memory_space<vmem>>, %arg2: memref<32x1xf32, #tpu.memory_space<vmem>>, %arg3: memref<2x32x256xf32, #tpu.memory_space<vmem>>, %arg4: memref<2x32x256xf32, #tpu.memory_space<vmem>>) attributes {dimension_semantics = [], scalar_prefetch = 0 : i64, scratch_operands = 0 : i64, tpu.core_type = #tpu.core_type<tc>} {
    %c0 = arith.constant 0 : index
    %c0_0 = arith.constant 0 : index
    %c0_1 = arith.constant 0 : index
    %0 = vector.load %arg0[%c0, %c0_0, %c0_1] : memref<2x8x256xf32, #tpu.memory_space<vmem>>, vector<1x8x256xf32>
    %1 = vector.shape_cast %0 : vector<1x8x256xf32> to vector<8x256xf32>
    %c1 = arith.constant 1 : index
    %c0_2 = arith.constant 0 : index
    %c0_3 = arith.constant 0 : index
    %2 = vector.load %arg0[%c1, %c0_2, %c0_3] : memref<2x8x256xf32, #tpu.memory_space<vmem>>, vector<1x8x256xf32>
    %3 = vector.shape_cast %2 : vector<1x8x256xf32> to vector<8x256xf32>
    %4 = tpu.concatenate %1, %3 in 1 : vector<8x256xf32>, vector<8x256xf32> -> vector<8x512xf32>
    %cst = arith.constant 0.000000e+00 : f32
    %5 = vector.broadcast %cst : f32 to vector<8x128xf32>
    %6 = tpu.concatenate %5, %4, %5 in 1 : vector<8x128xf32>, vector<8x512xf32>, vector<8x128xf32> -> vector<8x768xf32>
    %7 = tpu.iota {dimensions = array<i32: 1>} : vector<1x512xi32>
    %8 = arith.sitofp %7 : vector<1x512xi32> to vector<1x512xf32>
    %cst_4 = arith.constant 2.560000e+02 : f32
    %9 = vector.broadcast %cst_4 : f32 to vector<1x512xf32>
    %10 = arith.divf %8, %9 : vector<1x512xf32>
    %11 = math.floor %10 : vector<1x512xf32>
    %cst_5 = arith.constant 2.560000e+02 : f32
    %12 = vector.broadcast %cst_5 : f32 to vector<1x512xf32>
    %13 = arith.mulf %12, %11 : vector<1x512xf32>
    %14 = arith.subf %8, %13 : vector<1x512xf32>
    %cst_6 = arith.constant 1.600000e+01 : f32
    %15 = vector.broadcast %cst_6 : f32 to vector<1x512xf32>
    %16 = arith.divf %14, %15 : vector<1x512xf32>
    %17 = math.floor %16 : vector<1x512xf32>
    %cst_7 = arith.constant 1.600000e+01 : f32
    %18 = vector.broadcast %cst_7 : f32 to vector<1x512xf32>
    %19 = arith.mulf %18, %17 : vector<1x512xf32>
    %20 = arith.subf %14, %19 : vector<1x512xf32>
    %cst_8 = arith.constant 1.000000e+00 : f32
    %21 = vector.broadcast %cst_8 : f32 to vector<1x512xf32>
    %22 = arith.cmpf oge, %17, %21 : vector<1x512xf32>
    %23 = arith.extui %22 : vector<1x512xi1> to vector<1x512xi32>
    %24 = arith.sitofp %23 : vector<1x512xi32> to vector<1x512xf32>
    %cst_9 = arith.constant 1.400000e+01 : f32
    %25 = vector.broadcast %cst_9 : f32 to vector<1x512xf32>
    %26 = arith.cmpf ole, %17, %25 : vector<1x512xf32>
    %27 = arith.extui %26 : vector<1x512xi1> to vector<1x512xi32>
    %28 = arith.sitofp %27 : vector<1x512xi32> to vector<1x512xf32>
    %cst_10 = arith.constant 1.000000e+00 : f32
    %29 = vector.broadcast %cst_10 : f32 to vector<1x512xf32>
    %30 = arith.cmpf oge, %20, %29 : vector<1x512xf32>
    %31 = arith.extui %30 : vector<1x512xi1> to vector<1x512xi32>
    %32 = arith.sitofp %31 : vector<1x512xi32> to vector<1x512xf32>
    %cst_11 = arith.constant 1.400000e+01 : f32
    %33 = vector.broadcast %cst_11 : f32 to vector<1x512xf32>
    %34 = arith.cmpf ole, %20, %33 : vector<1x512xf32>
    %35 = arith.extui %34 : vector<1x512xi1> to vector<1x512xi32>
    %36 = arith.sitofp %35 : vector<1x512xi32> to vector<1x512xf32>
    %37 = vector.extract_strided_slice %6 {offsets = [0, 111], sizes = [8, 512], strides = [1, 1]} : vector<8x768xf32> to vector<8x512xf32>
    %38 = arith.mulf %24, %32 : vector<1x512xf32>
    %39 = vector.broadcast %38 : vector<1x512xf32> to vector<8x512xf32>
    %40 = arith.mulf %37, %39 : vector<8x512xf32>
    %41 = vector.extract_strided_slice %6 {offsets = [0, 112], sizes = [8, 512], strides = [1, 1]} : vector<8x768xf32> to vector<8x512xf32>
    %42 = vector.broadcast %24 : vector<1x512xf32> to vector<8x512xf32>
    %43 = arith.mulf %41, %42 : vector<8x512xf32>
    %44 = vector.extract_strided_slice %6 {offsets = [0, 113], sizes = [8, 512], strides = [1, 1]} : vector<8x768xf32> to vector<8x512xf32>
    %45 = arith.mulf %24, %36 : vector<1x512xf32>
    %46 = vector.broadcast %45 : vector<1x512xf32> to vector<8x512xf32>
    %47 = arith.mulf %44, %46 : vector<8x512xf32>
    %48 = vector.extract_strided_slice %6 {offsets = [0, 127], sizes = [8, 512], strides = [1, 1]} : vector<8x768xf32> to vector<8x512xf32>
    %49 = vector.broadcast %32 : vector<1x512xf32> to vector<8x512xf32>
    %50 = arith.mulf %48, %49 : vector<8x512xf32>
    %51 = vector.extract_strided_slice %6 {offsets = [0, 128], sizes = [8, 512], strides = [1, 1]} : vector<8x768xf32> to vector<8x512xf32>
    %52 = vector.extract_strided_slice %6 {offsets = [0, 129], sizes = [8, 512], strides = [1, 1]} : vector<8x768xf32> to vector<8x512xf32>
    %53 = vector.broadcast %36 : vector<1x512xf32> to vector<8x512xf32>
    %54 = arith.mulf %52, %53 : vector<8x512xf32>
    %55 = vector.extract_strided_slice %6 {offsets = [0, 143], sizes = [8, 512], strides = [1, 1]} : vector<8x768xf32> to vector<8x512xf32>
    %56 = arith.mulf %28, %32 : vector<1x512xf32>
    %57 = vector.broadcast %56 : vector<1x512xf32> to vector<8x512xf32>
    %58 = arith.mulf %55, %57 : vector<8x512xf32>
    %59 = vector.extract_strided_slice %6 {offsets = [0, 144], sizes = [8, 512], strides = [1, 1]} : vector<8x768xf32> to vector<8x512xf32>
    %60 = vector.broadcast %28 : vector<1x512xf32> to vector<8x512xf32>
    %61 = arith.mulf %59, %60 : vector<8x512xf32>
    %62 = vector.extract_strided_slice %6 {offsets = [0, 145], sizes = [8, 512], strides = [1, 1]} : vector<8x768xf32> to vector<8x512xf32>
    %63 = arith.mulf %28, %36 : vector<1x512xf32>
    %64 = vector.broadcast %63 : vector<1x512xf32> to vector<8x512xf32>
    %65 = arith.mulf %62, %64 : vector<8x512xf32>
    %66 = tpu.concatenate %40, %43, %47, %50, %51, %54, %58, %61, %65 in 0 : vector<8x512xf32>, vector<8x512xf32>, vector<8x512xf32>, vector<8x512xf32>, vector<8x512xf32>, vector<8x512xf32>, vector<8x512xf32>, vector<8x512xf32>, vector<8x512xf32> -> vector<72x512xf32>
    %c0_12 = arith.constant 0 : index
    %c0_13 = arith.constant 0 : index
    %67 = vector.load %arg1[%c0_12, %c0_13] : memref<32x72xbf16, #tpu.memory_space<vmem>>, vector<32x72xbf16>
    %68 = arith.truncf %66 : vector<72x512xf32> to vector<72x512xbf16>
    %cst_14 = arith.constant dense<0.000000e+00> : vector<32x512xf32>
    %69 = tpu.matmul %67, %68, %cst_14 {dimension_numbers = #tpu.dot_dimension_numbers<[1], [0], [0], [1], [0, 0, 1, 1], [], []>} : vector<32x72xbf16>, vector<72x512xbf16>, vector<32x512xf32> -> vector<32x512xf32>
    %c0_15 = arith.constant 0 : index
    %c0_16 = arith.constant 0 : index
    %70 = vector.load %arg2[%c0_15, %c0_16] : memref<32x1xf32, #tpu.memory_space<vmem>>, vector<32x1xf32>
    %71 = vector.extract_strided_slice %69 {offsets = [0, 0], sizes = [32, 256], strides = [1, 1]} : vector<32x512xf32> to vector<32x256xf32>
    %72 = vector.broadcast %70 : vector<32x1xf32> to vector<32x256xf32>
    %73 = arith.addf %71, %72 : vector<32x256xf32>
    %c0_17 = arith.constant 0 : index
    %c0_18 = arith.constant 0 : index
    %c0_19 = arith.constant 0 : index
    %74 = vector.load %arg3[%c0_17, %c0_18, %c0_19] : memref<2x32x256xf32, #tpu.memory_space<vmem>>, vector<1x32x256xf32>
    %75 = vector.shape_cast %74 : vector<1x32x256xf32> to vector<32x256xf32>
    %76 = arith.addf %73, %75 : vector<32x256xf32>
    %c0_20 = arith.constant 0 : index
    %c0_21 = arith.constant 0 : index
    %c0_22 = arith.constant 0 : index
    %77 = vector.load %arg4[%c0_20, %c0_21, %c0_22] : memref<2x32x256xf32, #tpu.memory_space<vmem>>, vector<1x32x256xf32>
    %78 = vector.shape_cast %77 : vector<1x32x256xf32> to vector<32x256xf32>
    %79 = vector.shape_cast %76 : vector<32x256xf32> to vector<1x32x256xf32>
    tpu.vector_store %arg4[%c0_20, %c0_21, %c0_22], %79 {strides = array<i32>} : memref<2x32x256xf32, #tpu.memory_space<vmem>>, vector<1x32x256xf32>,
    %80 = vector.extract_strided_slice %69 {offsets = [0, 256], sizes = [32, 256], strides = [1, 1]} : vector<32x512xf32> to vector<32x256xf32>
    %81 = vector.broadcast %70 : vector<32x1xf32> to vector<32x256xf32>
    %82 = arith.addf %80, %81 : vector<32x256xf32>
    %c1_23 = arith.constant 1 : index
    %c0_24 = arith.constant 0 : index
    %c0_25 = arith.constant 0 : index
    %83 = vector.load %arg3[%c1_23, %c0_24, %c0_25] : memref<2x32x256xf32, #tpu.memory_space<vmem>>, vector<1x32x256xf32>
    %84 = vector.shape_cast %83 : vector<1x32x256xf32> to vector<32x256xf32>
    %85 = arith.addf %82, %84 : vector<32x256xf32>
    %c1_26 = arith.constant 1 : index
    %c0_27 = arith.constant 0 : index
    %c0_28 = arith.constant 0 : index
    %86 = vector.load %arg4[%c1_26, %c0_27, %c0_28] : memref<2x32x256xf32, #tpu.memory_space<vmem>>, vector<1x32x256xf32>
    %87 = vector.shape_cast %86 : vector<1x32x256xf32> to vector<32x256xf32>
    %88 = vector.shape_cast %85 : vector<32x256xf32> to vector<1x32x256xf32>
    tpu.vector_store %arg4[%c1_26, %c0_27, %c0_28], %88 {strides = array<i32>} : memref<2x32x256xf32, #tpu.memory_space<vmem>>, vector<1x32x256xf32>,
    return
  }
}

</mosaic_0001>

<llo_original>
// kernel: loop_forward.1
$region0: #{loop_forward.1}
  #allocation0 [shape = 'u32[]', space=smem, size = 0x4, offset = 0x4, fixed_abs, tag = 'smem constant byte address 0x4 - core index']
  #allocation1 [shape = 'u32[72,128]{1,0:T(1,128)}', space=vmem, size = 0x9000, scoped, tag = 'internal scratch']
  %s0 = inlined_call_operand.vmem [shape: f32[2,8,256], index: 0, kind: input, shape index: {}]
  %s1 = inlined_call_operand.vmem [shape: bf16[32,72], index: 1, kind: input, shape index: {}]
  %s2 = inlined_call_operand.vmem [shape: f32[32,1], index: 2, kind: input, shape index: {}]
  %s3 = inlined_call_operand.vmem [shape: f32[2,32,256], index: 3, kind: input, shape index: {}, may-alias: {3,4}]
  %s4 = inlined_call_operand.vmem [shape: f32[2,32,256], index: 4, kind: output, shape index: {}, may-alias: {3,4}]
  %s5 = sld [smem:[#allocation0]]
  $region26: #{loop_forward.1} parent=0
    _
  %s7 = ssub.s32 1, %s5
  %s8 = scalar_select 0, %s7, %s5
  // Predicated region
  $region2: #{loop_forward.1} parent=0 // pred_check
    _
  $region3: #{loop_forward.1} parent=0 // pred_check_branch
    %10 = sbr.rel (0) target = $region5
  $region4: #{loop_forward.1} parent=0 // pred_region
    _
  $region5: #{loop_forward.1} parent=0 // pred_fallthru
    _
  // Predicated region
  $region6: #{loop_forward.1} parent=0 // pred_check
    _
  $region7: #{loop_forward.1} parent=0 // pred_check_branch
    %12 = sbr.rel (0) target = $region9
  $region8: #{loop_forward.1} parent=0 // pred_region
    _
  $region9: #{loop_forward.1} parent=0 // pred_fallthru
    _
  // Predicated region
  $region10: #{loop_forward.1} parent=0 // pred_check
    _
  $region11: #{loop_forward.1} parent=0 // pred_check_branch
    %14 = sbr.rel (0) target = $region13
  $region12: #{loop_forward.1} parent=0 // pred_region
    _
  $region13: #{loop_forward.1} parent=0 // pred_fallthru
    _
  // Predicated region
  $region14: #{loop_forward.1} parent=0 // pred_check
    _
  $region15: #{loop_forward.1} parent=0 // pred_check_branch
    %16 = sbr.rel (0) target = $region17
  $region16: #{loop_forward.1} parent=0 // pred_region
    _
  $region17: #{loop_forward.1} parent=0 // pred_fallthru
    _
  %v18 = vld [vmem:[%s0] sm:$0xff]
  %v19 = vld [vmem:[%s0 + $0x8] sm:$0xff]
  %s20 = scalar_lea.vmem %s0, 16
  %v21 = vld [vmem:[%s20] sm:$0xff]
  %v22 = vld [vmem:[%s20 + $0x8] sm:$0xff]
  %v23 = vlaneseq
  %v24 = vand.u32 %v23, 127
  %v25 = vadd.s32 %v24, 128
  %v26 = vadd.s32 %v24, 256
  %v27 = vadd.s32 %v24, 384
  %v28 = vcvt.s32.f32 %v24
  %v29 = vcvt.s32.f32 %v25
  %v30 = vcvt.s32.f32 %v26
  %v31 = vcvt.s32.f32 %v27
  %v32 = vrcp.pop 256.0
  %v33 = vmul.f32 256.0, %v32
  %v34 = vsub.f32 1.0, %v33
  %v35 = vmul.f32 %v32, %v34
  %v36 = vadd.f32 %v32, %v35
  %vm37 = vweird.f32 %v32
  %v38 = vsel %vm37, %v32, %v36
  %v39 = vmul.f32 %v28, %v38
  %v40 = vmul.f32 %v29, %v38
  %v41 = vmul.f32 %v30, %v38
  %v42 = vmul.f32 %v31, %v38
  %v43 = vfloor.f32 %v39
  %v44 = vfloor.f32 %v40
  %v45 = vfloor.f32 %v41
  %v46 = vfloor.f32 %v42
  %v47 = vmul.f32 %v43, 256.0
  %v48 = vmul.f32 %v44, 256.0
  %v49 = vmul.f32 %v45, 256.0
  %v50 = vmul.f32 %v46, 256.0
  %v51 = vsub.f32 %v28, %v47
  %v52 = vsub.f32 %v29, %v48
  %v53 = vsub.f32 %v30, %v49
  %v54 = vsub.f32 %v31, %v50
  %v55 = vrcp.pop 16.0
  %v56 = vmul.f32 16.0, %v55
  %v57 = vsub.f32 1.0, %v56
  %v58 = vmul.f32 %v55, %v57
  %v59 = vadd.f32 %v55, %v58
  %vm60 = vweird.f32 %v55
  %v61 = vsel %vm60, %v55, %v59
  %v62 = vmul.f32 %v51, %v61
  %v63 = vmul.f32 %v52, %v61
  %v64 = vmul.f32 %v53, %v61
  %v65 = vmul.f32 %v54, %v61
  %v66 = vfloor.f32 %v62
  %v67 = vfloor.f32 %v63
  %v68 = vfloor.f32 %v64
  %v69 = vfloor.f32 %v65
  %v70 = vmul.f32 %v66, 16.0
  %v71 = vmul.f32 %v67, 16.0
  %v72 = vmul.f32 %v68, 16.0
  %v73 = vmul.f32 %v69, 16.0
  %v74 = vsub.f32 %v51, %v70
  %v75 = vsub.f32 %v52, %v71
  %v76 = vsub.f32 %v53, %v72
  %v77 = vsub.f32 %v54, %v73
  %vm78 = vcmp.ge.f32.partialorder %v66, 1.0
  %vm79 = vcmp.ge.f32.partialorder %v67, 1.0
  %vm80 = vcmp.ge.f32.partialorder %v68, 1.0
  %vm81 = vcmp.ge.f32.partialorder %v69, 1.0
  %v82 = vsel %vm78, 1, 0
  %v83 = vsel %vm79, 1, 0
  %v84 = vsel %vm80, 1, 0
  %v85 = vsel %vm81, 1, 0
  %v86 = vcvt.s32.f32 %v82
  %v87 = vcvt.s32.f32 %v83
  %v88 = vcvt.s32.f32 %v84
  %v89 = vcvt.s32.f32 %v85
  %vm90 = vcmp.le.f32.partialorder %v66, 14.0
  %vm91 = vcmp.le.f32.partialorder %v67, 14.0
  %vm92 = vcmp.le.f32.partialorder %v68, 14.0
  %vm93 = vcmp.le.f32.partialorder %v69, 14.0
  %v94 = vsel %vm90, 1, 0
  %v95 = vsel %vm91, 1, 0
  %v96 = vsel %vm92, 1, 0
  %v97 = vsel %vm93, 1, 0
  %v98 = vcvt.s32.f32 %v94
  %v99 = vcvt.s32.f32 %v95
  %v100 = vcvt.s32.f32 %v96
  %v101 = vcvt.s32.f32 %v97
  %vm102 = vcmp.ge.f32.partialorder %v74, 1.0
  %vm103 = vcmp.ge.f32.partialorder %v75, 1.0
  %vm104 = vcmp.ge.f32.partialorder %v76, 1.0
  %vm105 = vcmp.ge.f32.partialorder %v77, 1.0
  %v106 = vsel %vm102, 1, 0
  %v107 = vsel %vm103, 1, 0
  %v108 = vsel %vm104, 1, 0
  %v109 = vsel %vm105, 1, 0
  %v110 = vcvt.s32.f32 %v106
  %v111 = vcvt.s32.f32 %v107
  %v112 = vcvt.s32.f32 %v108
  %v113 = vcvt.s32.f32 %v109
  %vm114 = vcmp.le.f32.partialorder %v74, 14.0
  %vm115 = vcmp.le.f32.partialorder %v75, 14.0
  %vm116 = vcmp.le.f32.partialorder %v76, 14.0
  %vm117 = vcmp.le.f32.partialorder %v77, 14.0
  %v118 = vsel %vm114, 1, 0
  %v119 = vsel %vm115, 1, 0
  %v120 = vsel %vm116, 1, 0
  %v121 = vsel %vm117, 1, 0
  %v122 = vcvt.s32.f32 %v118
  %v123 = vcvt.s32.f32 %v119
  %v124 = vcvt.s32.f32 %v120
  %v125 = vcvt.s32.f32 %v121
  %v126 = vmul.f32 %v86, %v110
  %v127 = vmul.f32 %v87, %v111
  %v128 = vmul.f32 %v88, %v112
  %v129 = vmul.f32 %v89, %v113
  %134 = vrot.lane.b32.xlu0 %v126, 111
  %v135 = vpop.permute.xlu0 %134
  %136 = vrot.lane.b32.xlu0 %v127, 111
  %v137 = vpop.permute.xlu0 %136
  %138 = vrot.lane.b32.xlu0 %v128, 111
  %v139 = vpop.permute.xlu0 %138
  %140 = vrot.lane.b32.xlu0 %v129, 111
  %v141 = vpop.permute.xlu0 %140
  %vm142 = vcmask 908288
  %v143 = vsel %vm142, %v135, %v137
  %v144 = vsel %vm142, %v137, %v139
  %v145 = vsel %vm142, %v139, %v141
  %v151 = vmul.f32 %v135, 0.0
  %v152 = vmul.f32 %v18, %v143
  %v153 = vmul.f32 %v19, %v144
  %v154 = vmul.f32 %v21, %v145
  %v155 = vmul.f32 %v22, %v141
  %160 = vrot.lane.b32.xlu0 %v86, 112
  %v161 = vpop.permute.xlu0 %160
  %162 = vrot.lane.b32.xlu0 %v87, 112
  %v163 = vpop.permute.xlu0 %162
  %164 = vrot.lane.b32.xlu0 %v88, 112
  %v165 = vpop.permute.xlu0 %164
  %166 = vrot.lane.b32.xlu0 %v89, 112
  %v167 = vpop.permute.xlu0 %166
  %vm168 = vcmask 916480
  %v169 = vsel %vm168, %v161, %v163
  %v170 = vsel %vm168, %v163, %v165
  %v171 = vsel %vm168, %v165, %v167
  %v177 = vmul.f32 %v161, 0.0
  %v178 = vmul.f32 %v18, %v169
  %v179 = vmul.f32 %v19, %v170
  %v180 = vmul.f32 %v21, %v171
  %v181 = vmul.f32 %v22, %v167
  %v182 = vmul.f32 %v86, %v122
  %v183 = vmul.f32 %v87, %v123
  %v184 = vmul.f32 %v88, %v124
  %v185 = vmul.f32 %v89, %v125
  %190 = vrot.lane.b32.xlu0 %v182, 113
  %v191 = vpop.permute.xlu0 %190
  %192 = vrot.lane.b32.xlu0 %v183, 113
  %v193 = vpop.permute.xlu0 %192
  %194 = vrot.lane.b32.xlu0 %v184, 113
  %v195 = vpop.permute.xlu0 %194
  %196 = vrot.lane.b32.xlu0 %v185, 113
  %v197 = vpop.permute.xlu0 %196
  %vm198 = vcmask 924672
  %v199 = vsel %vm198, %v191, %v193
  %v200 = vsel %vm198, %v193, %v195
  %v201 = vsel %vm198, %v195, %v197
  %v207 = vmul.f32 %v191, 0.0
  %v208 = vmul.f32 %v18, %v199
  %v209 = vmul.f32 %v19, %v200
  %v210 = vmul.f32 %v21, %v201
  %v211 = vmul.f32 %v22, %v197
  %216 = vrot.lane.b32.xlu0 %v110, 127
  %v217 = vpop.permute.xlu0 %216
  %218 = vrot.lane.b32.xlu0 %v111, 127
  %v219 = vpop.permute.xlu0 %218
  %220 = vrot.lane.b32.xlu0 %v112, 127
  %v221 = vpop.permute.xlu0 %220
  %222 = vrot.lane.b32.xlu0 %v113, 127
  %v223 = vpop.permute.xlu0 %222
  %vm224 = vcmask 1039360
  %v225 = vsel %vm224, %v217, %v219
  %v226 = vsel %vm224, %v219, %v221
  %v227 = vsel %vm224, %v221, %v223
  %v233 = vmul.f32 %v217, 0.0
  %v234 = vmul.f32 %v18, %v225
  %v235 = vmul.f32 %v19, %v226
  %v236 = vmul.f32 %v21, %v227
  %v237 = vmul.f32 %v22, %v223
  %242 = vrot.lane.b32.xlu0 %v122, 1
  %v243 = vpop.permute.xlu0 %242
  %244 = vrot.lane.b32.xlu0 %v123, 1
  %v245 = vpop.permute.xlu0 %244
  %246 = vrot.lane.b32.xlu0 %v124, 1
  %v247 = vpop.permute.xlu0 %246
  %248 = vrot.lane.b32.xlu0 %v125, 1
  %v249 = vpop.permute.xlu0 %248
  %vm250 = vcmask 7168
  %v251 = vsel %vm250, %v243, %v245
  %v252 = vsel %vm250, %v245, %v247
  %v253 = vsel %vm250, %v247, %v249
  %v259 = vmul.f32 %v18, %v243
  %v260 = vmul.f32 %v19, %v251
  %v261 = vmul.f32 %v21, %v252
  %v262 = vmul.f32 %v22, %v253
  %v263 = vmul.f32 %v249, 0.0
  %v264 = vmul.f32 %v98, %v110
  %v265 = vmul.f32 %v99, %v111
  %v266 = vmul.f32 %v100, %v112
  %v267 = vmul.f32 %v101, %v113
  %272 = vrot.lane.b32.xlu0 %v264, 15
  %v273 = vpop.permute.xlu0 %272
  %274 = vrot.lane.b32.xlu0 %v265, 15
  %v275 = vpop.permute.xlu0 %274
  %276 = vrot.lane.b32.xlu0 %v266, 15
  %v277 = vpop.permute.xlu0 %276
  %278 = vrot.lane.b32.xlu0 %v267, 15
  %v279 = vpop.permute.xlu0 %278
  %vm280 = vcmask 121856
  %v281 = vsel %vm280, %v273, %v275
  %v282 = vsel %vm280, %v275, %v277
  %v283 = vsel %vm280, %v277, %v279
  %v289 = vmul.f32 %v18, %v273
  %v290 = vmul.f32 %v19, %v281
  %v291 = vmul.f32 %v21, %v282
  %v292 = vmul.f32 %v22, %v283
  %v293 = vmul.f32 %v279, 0.0
  %298 = vrot.lane.b32.xlu0 %v98, 16
  %v299 = vpop.permute.xlu0 %298
  %300 = vrot.lane.b32.xlu0 %v99, 16
  %v301 = vpop.permute.xlu0 %300
  %302 = vrot.lane.b32.xlu0 %v100, 16
  %v303 = vpop.permute.xlu0 %302
  %304 = vrot.lane.b32.xlu0 %v101, 16
  %v305 = vpop.permute.xlu0 %304
  %vm306 = vcmask 130048
  %v307 = vsel %vm306, %v299, %v301
  %v308 = vsel %vm306, %v301, %v303
  %v309 = vsel %vm306, %v303, %v305
  %v315 = vmul.f32 %v18, %v299
  %v316 = vmul.f32 %v19, %v307
  %v317 = vmul.f32 %v21, %v308
  %v318 = vmul.f32 %v22, %v309
  %v319 = vmul.f32 %v305, 0.0
  %v320 = vmul.f32 %v98, %v122
  %v321 = vmul.f32 %v99, %v123
  %v322 = vmul.f32 %v100, %v124
  %v323 = vmul.f32 %v101, %v125
  %328 = vrot.lane.b32.xlu0 %v320, 17
  %v329 = vpop.permute.xlu0 %328
  %330 = vrot.lane.b32.xlu0 %v321, 17
  %v331 = vpop.permute.xlu0 %330
  %332 = vrot.lane.b32.xlu0 %v322, 17
  %v333 = vpop.permute.xlu0 %332
  %334 = vrot.lane.b32.xlu0 %v323, 17
  %v335 = vpop.permute.xlu0 %334
  %vm336 = vcmask 138240
  %v337 = vsel %vm336, %v329, %v331
  %v338 = vsel %vm336, %v331, %v333
  %v339 = vsel %vm336, %v333, %v335
  %v345 = vmul.f32 %v18, %v329
  %v346 = vmul.f32 %v19, %v337
  %v347 = vmul.f32 %v21, %v338
  %v348 = vmul.f32 %v22, %v339
  %v349 = vmul.f32 %v335, 0.0
  %355 = vrot.lane.b32.xlu0 %v177, 127
  %v356 = vpop.permute.xlu0 %355
  %357 = vrot.lane.b32.xlu0 %v178, 127
  %v358 = vpop.permute.xlu0 %357
  %359 = vrot.lane.b32.xlu0 %v179, 127
  %v360 = vpop.permute.xlu0 %359
  %361 = vrot.lane.b32.xlu0 %v180, 127
  %v362 = vpop.permute.xlu0 %361
  %363 = vrot.lane.b32.xlu0 %v181, 127
  %v364 = vpop.permute.xlu0 %363
  %v365 = vsel %vm224, %v356, %v358
  %v366 = vsel %vm224, %v358, %v360
  %v367 = vsel %vm224, %v360, %v362
  %v368 = vsel %vm224, %v362, %v364
  %379 = vrot.lane.b32.xlu0 %v207, 126
  %v380 = vpop.permute.xlu0 %379
  %381 = vrot.lane.b32.xlu0 %v208, 126
  %v382 = vpop.permute.xlu0 %381
  %383 = vrot.lane.b32.xlu0 %v209, 126
  %v384 = vpop.permute.xlu0 %383
  %385 = vrot.lane.b32.xlu0 %v210, 126
  %v386 = vpop.permute.xlu0 %385
  %387 = vrot.lane.b32.xlu0 %v211, 126
  %v388 = vpop.permute.xlu0 %387
  %vm389 = vcmask 1031168
  %v390 = vsel %vm389, %v380, %v382
  %v391 = vsel %vm389, %v382, %v384
  %v392 = vsel %vm389, %v384, %v386
  %v393 = vsel %vm389, %v386, %v388
  %404 = vrot.lane.b32.xlu0 %v233, 112
  %v405 = vpop.permute.xlu0 %404
  %406 = vrot.lane.b32.xlu0 %v234, 112
  %v407 = vpop.permute.xlu0 %406
  %408 = vrot.lane.b32.xlu0 %v235, 112
  %v409 = vpop.permute.xlu0 %408
  %410 = vrot.lane.b32.xlu0 %v236, 112
  %v411 = vpop.permute.xlu0 %410
  %412 = vrot.lane.b32.xlu0 %v237, 112
  %v413 = vpop.permute.xlu0 %412
  %v414 = vsel %vm168, %v405, %v407
  %v415 = vsel %vm168, %v407, %v409
  %v416 = vsel %vm168, %v409, %v411
  %v417 = vsel %vm168, %v411, %v413
  %427 = vrot.lane.b32.xlu0 %v18, 111
  %v428 = vpop.permute.xlu0 %427
  %429 = vrot.lane.b32.xlu0 %v19, 111
  %v430 = vpop.permute.xlu0 %429
  %431 = vrot.lane.b32.xlu0 %v21, 111
  %v432 = vpop.permute.xlu0 %431
  %433 = vrot.lane.b32.xlu0 %v22, 111
  %v434 = vpop.permute.xlu0 %433
  %v435 = vsel %vm142, %v428, %v430
  %v436 = vsel %vm142, %v430, %v432
  %v437 = vsel %vm142, %v432, %v434
  %448 = vrot.lane.b32.xlu0 %v259, 110
  %v449 = vpop.permute.xlu0 %448
  %450 = vrot.lane.b32.xlu0 %v260, 110
  %v451 = vpop.permute.xlu0 %450
  %452 = vrot.lane.b32.xlu0 %v261, 110
  %v453 = vpop.permute.xlu0 %452
  %454 = vrot.lane.b32.xlu0 %v262, 110
  %v455 = vpop.permute.xlu0 %454
  %456 = vrot.lane.b32.xlu0 %v263, 110
  %v457 = vpop.permute.xlu0 %456
  %vm458 = vcmask 900096
  %v459 = vsel %vm458, %v449, %v451
  %v460 = vsel %vm458, %v451, %v453
  %v461 = vsel %vm458, %v453, %v455
  %v462 = vsel %vm458, %v455, %v457
  %473 = vrot.lane.b32.xlu0 %v289, 96
  %v474 = vpop.permute.xlu0 %473
  %475 = vrot.lane.b32.xlu0 %v290, 96
  %v476 = vpop.permute.xlu0 %475
  %477 = vrot.lane.b32.xlu0 %v291, 96
  %v478 = vpop.permute.xlu0 %477
  %479 = vrot.lane.b32.xlu0 %v292, 96
  %v480 = vpop.permute.xlu0 %479
  %481 = vrot.lane.b32.xlu0 %v293, 96
  %v482 = vpop.permute.xlu0 %481
  %vm483 = vcmask 785408
  %v484 = vsel %vm483, %v474, %v476
  %v485 = vsel %vm483, %v476, %v478
  %v486 = vsel %vm483, %v478, %v480
  %v487 = vsel %vm483, %v480, %v482
  %498 = vrot.lane.b32.xlu0 %v315, 95
  %v499 = vpop.permute.xlu0 %498
  %500 = vrot.lane.b32.xlu0 %v316, 95
  %v501 = vpop.permute.xlu0 %500
  %502 = vrot.lane.b32.xlu0 %v317, 95
  %v503 = vpop.permute.xlu0 %502
  %504 = vrot.lane.b32.xlu0 %v318, 95
  %v505 = vpop.permute.xlu0 %504
  %506 = vrot.lane.b32.xlu0 %v319, 95
  %v507 = vpop.permute.xlu0 %506
  %vm508 = vcmask 777216
  %v509 = vsel %vm508, %v499, %v501
  %v510 = vsel %vm508, %v501, %v503
  %v511 = vsel %vm508, %v503, %v505
  %v512 = vsel %vm508, %v505, %v507
  %523 = vrot.lane.b32.xlu0 %v345, 94
  %v524 = vpop.permute.xlu0 %523
  %525 = vrot.lane.b32.xlu0 %v346, 94
  %v526 = vpop.permute.xlu0 %525
  %527 = vrot.lane.b32.xlu0 %v347, 94
  %v528 = vpop.permute.xlu0 %527
  %529 = vrot.lane.b32.xlu0 %v348, 94
  %v530 = vpop.permute.xlu0 %529
  %531 = vrot.lane.b32.xlu0 %v349, 94
  %v532 = vpop.permute.xlu0 %531
  %vm533 = vcmask 769024
  %v534 = vsel %vm533, %v524, %v526
  %v535 = vsel %vm533, %v526, %v528
  %v536 = vsel %vm533, %v528, %v530
  %v537 = vsel %vm533, %v530, %v532
  %v543 = vld [vmem:[%s1] sm:$0xf]
  %v544 = vld [vmem:[%s1 + $0x4] sm:$0xf]
  %v545 = vld [vmem:[%s1 + $0x8] sm:$0xf]
  %v546 = vld [vmem:[%s1 + $0xc] sm:$0xf]
  %v547 = vpack.c.bf16 %v365, %v151
  %v548 = vpack.c.bf16 %v366, %v152
  %v549 = vpack.c.bf16 %v367, %v153
  %v550 = vpack.c.bf16 %v368, %v154
  %v551 = vpack.c.bf16 %v364, %v155
  %v552 = vpack.c.bf16 %v414, %v390
  %v553 = vpack.c.bf16 %v415, %v391
  %v554 = vpack.c.bf16 %v416, %v392
  %v555 = vpack.c.bf16 %v417, %v393
  %v556 = vpack.c.bf16 %v413, %v388
  %v557 = vpack.c.bf16 %v449, %v428
  %v558 = vpack.c.bf16 %v459, %v435
  %v559 = vpack.c.bf16 %v460, %v436
  %v560 = vpack.c.bf16 %v461, %v437
  %v561 = vpack.c.bf16 %v462, %v434
  %v562 = vpack.c.bf16 %v499, %v474
  %v563 = vpack.c.bf16 %v509, %v484
  %v564 = vpack.c.bf16 %v510, %v485
  %v565 = vpack.c.bf16 %v511, %v486
  %v566 = vpack.c.bf16 %v512, %v487
  %v567 = vpack.c.bf16 %v524, %v524
  %v568 = vpack.c.bf16 %v534, %v534
  %v569 = vpack.c.bf16 %v535, %v535
  %v570 = vpack.c.bf16 %v536, %v536
  %v571 = vpack.c.bf16 %v537, %v537
  %v576 = vunpack.c.l.b16 %v543
  %v577 = vunpack.c.l.b16 %v544
  %v578 = vunpack.c.l.b16 %v545
  %v579 = vunpack.c.l.b16 %v546
  %v580 = vpack.c.b16 %v577, %v576
  %v581 = vpack.c.b16 %v579, %v578
  %607 = vrot.lane.b32.xlu0 %v547, 17
  %v608 = vpop.permute.xlu0 %607
  %609 = vrot.lane.b32.xlu0 %v548, 17
  %v610 = vpop.permute.xlu0 %609
  %611 = vrot.lane.b32.xlu0 %v549, 17
  %v612 = vpop.permute.xlu0 %611
  %613 = vrot.lane.b32.xlu0 %v550, 17
  %v614 = vpop.permute.xlu0 %613
  %615 = vrot.lane.b32.xlu0 %v551, 17
  %v616 = vpop.permute.xlu0 %615
  %617 = vrot.lane.b32.xlu0 %v552, 17
  %v618 = vpop.permute.xlu0 %617
  %619 = vrot.lane.b32.xlu0 %v553, 17
  %v620 = vpop.permute.xlu0 %619
  %621 = vrot.lane.b32.xlu0 %v554, 17
  %v622 = vpop.permute.xlu0 %621
  %623 = vrot.lane.b32.xlu0 %v555, 17
  %v624 = vpop.permute.xlu0 %623
  %625 = vrot.lane.b32.xlu0 %v556, 17
  %v626 = vpop.permute.xlu0 %625
  %627 = vrot.lane.b32.xlu0 %v557, 17
  %v628 = vpop.permute.xlu0 %627
  %629 = vrot.lane.b32.xlu0 %v558, 17
  %v630 = vpop.permute.xlu0 %629
  %631 = vrot.lane.b32.xlu0 %v559, 17
  %v632 = vpop.permute.xlu0 %631
  %633 = vrot.lane.b32.xlu0 %v560, 17
  %v634 = vpop.permute.xlu0 %633
  %635 = vrot.lane.b32.xlu0 %v561, 17
  %v636 = vpop.permute.xlu0 %635
  %637 = vrot.lane.b32.xlu0 %v562, 17
  %v638 = vpop.permute.xlu0 %637
  %639 = vrot.lane.b32.xlu0 %v563, 17
  %v640 = vpop.permute.xlu0 %639
  %641 = vrot.lane.b32.xlu0 %v564, 17
  %v642 = vpop.permute.xlu0 %641
  %643 = vrot.lane.b32.xlu0 %v565, 17
  %v644 = vpop.permute.xlu0 %643
  %645 = vrot.lane.b32.xlu0 %v566, 17
  %v646 = vpop.permute.xlu0 %645
  %647 = vrot.lane.b32.xlu0 %v567, 17
  %v648 = vpop.permute.xlu0 %647
  %649 = vrot.lane.b32.xlu0 %v568, 17
  %v650 = vpop.permute.xlu0 %649
  %651 = vrot.lane.b32.xlu0 %v569, 17
  %v652 = vpop.permute.xlu0 %651
  %653 = vrot.lane.b32.xlu0 %v570, 17
  %v654 = vpop.permute.xlu0 %653
  %655 = vrot.lane.b32.xlu0 %v571, 17
  %v656 = vpop.permute.xlu0 %655
  %vm657 = vcmask 138240
  %v658 = vsel %vm657, %v608, %v610
  %v659 = vsel %vm657, %v610, %v612
  %v660 = vsel %vm657, %v612, %v614
  %v661 = vsel %vm657, %v614, %v616
  %v662 = vsel %vm657, %v618, %v620
  %v663 = vsel %vm657, %v620, %v622
  %v664 = vsel %vm657, %v622, %v624
  %v665 = vsel %vm657, %v624, %v626
  %v666 = vsel %vm657, %v628, %v630
  %v667 = vsel %vm657, %v630, %v632
  %v668 = vsel %vm657, %v632, %v634
  %v669 = vsel %vm657, %v634, %v636
  %v670 = vsel %vm657, %v638, %v640
  %v671 = vsel %vm657, %v640, %v642
  %v672 = vsel %vm657, %v642, %v644
  %v673 = vsel %vm657, %v644, %v646
  %v674 = vsel %vm657, %v648, %v650
  %v675 = vsel %vm657, %v650, %v652
  %v676 = vsel %vm657, %v652, %v654
  %v677 = vsel %vm657, %v654, %v656
  %vm694 = vcmask 588800
  %v696 = vsel %vm694, %v580, 0
  %v699 = vsel %vm694, %v581, 0
  %vm701 = vcmask 1043456
  %v703 = vsel %vm701, %v674, 0
  %v706 = vsel %vm701, %v675, 0
  %v709 = vsel %vm701, %v676, 0
  %v712 = vsel %vm701, %v677, 0
  %714 = vmatpush.bf16.msra.mxu0 0
  %715 = vmatpush.bf16.msra.mxu0 0
  %716 = vmatpush.bf16.msra.mxu0 0
  %717 = vmatpush.bf16.msra.mxu0 %v703
  %718 = vmatpush.bf16.msra.mxu0 %v670
  %719 = vmatpush.bf16.msra.mxu0 %v666
  %720 = vmatpush.bf16.msra.mxu0 %v662
  %721 = vmatpush.bf16.msra.mxu0 %v658
  %722 = vmatmul.bf16.gmra.mxu0 %v696
  %v723 = vpop.f32.mrf.mxu0
  %v724 = vadd.f32 0.0, %v723
  %v725 = vpop.f32.mrf.mxu0
  %v726 = vadd.f32 0.0, %v725
  %727 = vmatmul.bf16.gmra.mxu0 %v699
  %v728 = vpop.f32.mrf.mxu0
  %v729 = vadd.f32 0.0, %v728
  %v730 = vpop.f32.mrf.mxu0
  %v731 = vadd.f32 0.0, %v730
  %732 = vdwg.mxu0
  %733 = vmatpush.bf16.msra.mxu0 0
  %734 = vmatpush.bf16.msra.mxu0 0
  %735 = vmatpush.bf16.msra.mxu0 0
  %736 = vmatpush.bf16.msra.mxu0 %v706
  %737 = vmatpush.bf16.msra.mxu0 %v671
  %738 = vmatpush.bf16.msra.mxu0 %v667
  %739 = vmatpush.bf16.msra.mxu0 %v663
  %740 = vmatpush.bf16.msra.mxu0 %v659
  %741 = vmatmul.bf16.gmra.mxu0 %v696
  %v742 = vpop.f32.mrf.mxu0
  %v743 = vadd.f32 0.0, %v742
  %v744 = vpop.f32.mrf.mxu0
  %v745 = vadd.f32 0.0, %v744
  %746 = vmatmul.bf16.gmra.mxu0 %v699
  %v747 = vpop.f32.mrf.mxu0
  %v748 = vadd.f32 0.0, %v747
  %v749 = vpop.f32.mrf.mxu0
  %v750 = vadd.f32 0.0, %v749
  %751 = vdwg.mxu0
  %752 = vmatpush.bf16.msra.mxu0 0
  %753 = vmatpush.bf16.msra.mxu0 0
  %754 = vmatpush.bf16.msra.mxu0 0
  %755 = vmatpush.bf16.msra.mxu0 %v709
  %756 = vmatpush.bf16.msra.mxu0 %v672
  %757 = vmatpush.bf16.msra.mxu0 %v668
  %758 = vmatpush.bf16.msra.mxu0 %v664
  %759 = vmatpush.bf16.msra.mxu0 %v660
  %760 = vmatmul.bf16.gmra.mxu0 %v696
  %v761 = vpop.f32.mrf.mxu0
  %v762 = vadd.f32 0.0, %v761
  %v763 = vpop.f32.mrf.mxu0
  %v764 = vadd.f32 0.0, %v763
  %765 = vmatmul.bf16.gmra.mxu0 %v699
  %v766 = vpop.f32.mrf.mxu0
  %v767 = vadd.f32 0.0, %v766
  %v768 = vpop.f32.mrf.mxu0
  %v769 = vadd.f32 0.0, %v768
  %770 = vdwg.mxu0
  %771 = vmatpush.bf16.msra.mxu0 0
  %772 = vmatpush.bf16.msra.mxu0 0
  %773 = vmatpush.bf16.msra.mxu0 0
  %774 = vmatpush.bf16.msra.mxu0 %v712
  %775 = vmatpush.bf16.msra.mxu0 %v673
  %776 = vmatpush.bf16.msra.mxu0 %v669
  %777 = vmatpush.bf16.msra.mxu0 %v665
  %778 = vmatpush.bf16.msra.mxu0 %v661
  %779 = vmatmul.bf16.gmra.mxu0 %v696
  %v780 = vpop.f32.mrf.mxu0
  %v781 = vadd.f32 0.0, %v780
  %v782 = vpop.f32.mrf.mxu0
  %v783 = vadd.f32 0.0, %v782
  %784 = vmatmul.bf16.gmra.mxu0 %v699
  %v785 = vpop.f32.mrf.mxu0
  %v786 = vadd.f32 0.0, %v785
  %v787 = vpop.f32.mrf.mxu0
  %v788 = vadd.f32 0.0, %v787
  %789 = vdwg.mxu0
  %v790 = vld [vmem:[%s2] sm:$0xff]
  %v791 = vld [vmem:[%s2 + $0x8] sm:$0xff]
  %v792 = vld [vmem:[%s2 + $0x10] sm:$0xff]
  %v793 = vld [vmem:[%s2 + $0x18] sm:$0xff]
  %795 = vset.pattern.permute.xlu0 0
  %796 = vperm.xlu0 %795, %v790
  %v797 = vpop.permute.xlu0 %796
  %800 = vset.pattern.permute.xlu0 0
  %801 = vperm.xlu0 %800, %v791
  %v802 = vpop.permute.xlu0 %801
  %805 = vset.pattern.permute.xlu0 0
  %806 = vperm.xlu0 %805, %v792
  %v807 = vpop.permute.xlu0 %806
  %810 = vset.pattern.permute.xlu0 0
  %811 = vperm.xlu0 %810, %v793
  %v812 = vpop.permute.xlu0 %811
  %v814 = vadd.f32 %v724, %v797
  %v815 = vadd.f32 %v743, %v797
  %v816 = vadd.f32 %v726, %v802
  %v817 = vadd.f32 %v745, %v802
  %v818 = vadd.f32 %v729, %v807
  %v819 = vadd.f32 %v748, %v807
  %v820 = vadd.f32 %v731, %v812
  %v821 = vadd.f32 %v750, %v812
  %v822 = vld [vmem:[%s3] sm:$0xff]
  %v823 = vld [vmem:[%s3 + $0x8] sm:$0xff]
  %v824 = vld [vmem:[%s3 + $0x10] sm:$0xff]
  %v825 = vld [vmem:[%s3 + $0x18] sm:$0xff]
  %v826 = vld [vmem:[%s3 + $0x20] sm:$0xff]
  %v827 = vld [vmem:[%s3 + $0x28] sm:$0xff]
  %v828 = vld [vmem:[%s3 + $0x30] sm:$0xff]
  %v829 = vld [vmem:[%s3 + $0x38] sm:$0xff]
  %v830 = vadd.f32 %v814, %v822
  %v831 = vadd.f32 %v815, %v823
  %v832 = vadd.f32 %v816, %v824
  %v833 = vadd.f32 %v817, %v825
  %v834 = vadd.f32 %v818, %v826
  %v835 = vadd.f32 %v819, %v827
  %v836 = vadd.f32 %v820, %v828
  %v837 = vadd.f32 %v821, %v829
  %838 = vst [vmem:[%s4] sm:$0xff] %v830
  %839 = vst [vmem:[%s4 + $0x8] sm:$0xff] %v831
  %840 = vst [vmem:[%s4 + $0x10] sm:$0xff] %v832
  %841 = vst [vmem:[%s4 + $0x18] sm:$0xff] %v833
  %842 = vst [vmem:[%s4 + $0x20] sm:$0xff] %v834
  %843 = vst [vmem:[%s4 + $0x28] sm:$0xff] %v835
  %844 = vst [vmem:[%s4 + $0x30] sm:$0xff] %v836
  %845 = vst [vmem:[%s4 + $0x38] sm:$0xff] %v837
  %v846 = vadd.f32 %v762, %v797
  %v847 = vadd.f32 %v781, %v797
  %v848 = vadd.f32 %v764, %v802
  %v849 = vadd.f32 %v783, %v802
  %v850 = vadd.f32 %v767, %v807
  %v851 = vadd.f32 %v786, %v807
  %v852 = vadd.f32 %v769, %v812
  %v853 = vadd.f32 %v788, %v812
  %s854 = scalar_lea.vmem %s3, 64
  %v855 = vld [vmem:[%s854] sm:$0xff]
  %v856 = vld [vmem:[%s854 + $0x8] sm:$0xff]
  %v857 = vld [vmem:[%s854 + $0x10] sm:$0xff]
  %v858 = vld [vmem:[%s854 + $0x18] sm:$0xff]
  %v859 = vld [vmem:[%s854 + $0x20] sm:$0xff]
  %v860 = vld [vmem:[%s854 + $0x28] sm:$0xff]
  %v861 = vld [vmem:[%s854 + $0x30] sm:$0xff]
  %v862 = vld [vmem:[%s854 + $0x38] sm:$0xff]
  %v863 = vadd.f32 %v846, %v855
  %v864 = vadd.f32 %v847, %v856
  %v865 = vadd.f32 %v848, %v857
  %v866 = vadd.f32 %v849, %v858
  %v867 = vadd.f32 %v850, %v859
  %v868 = vadd.f32 %v851, %v860
  %v869 = vadd.f32 %v852, %v861
  %v870 = vadd.f32 %v853, %v862
  %s871 = scalar_lea.vmem %s4, 64
  %872 = vst [vmem:[%s871] sm:$0xff] %v863
  %873 = vst [vmem:[%s871 + $0x8] sm:$0xff] %v864
  %874 = vst [vmem:[%s871 + $0x10] sm:$0xff] %v865
  %875 = vst [vmem:[%s871 + $0x18] sm:$0xff] %v866
  %876 = vst [vmem:[%s871 + $0x20] sm:$0xff] %v867
  %877 = vst [vmem:[%s871 + $0x28] sm:$0xff] %v868
  %878 = vst [vmem:[%s871 + $0x30] sm:$0xff] %v869
  %879 = vst [vmem:[%s871 + $0x38] sm:$0xff] %v870
  // Predicated region
  $region18: #{loop_forward.1} parent=0 // pred_check
    _
  $region19: #{loop_forward.1} parent=0 // pred_check_branch
    %881 = sbr.rel (0) target = $region21
  $region20: #{loop_forward.1} parent=0 // pred_region
    _
  $region21: #{loop_forward.1} parent=0 // pred_fallthru
    _
  // Predicated region
  $region22: #{loop_forward.1} parent=0 // pred_check
    _
  $region23: #{loop_forward.1} parent=0 // pred_check_branch
    %883 = sbr.rel (0) target = $region25
  $region24: #{loop_forward.1} parent=0 // pred_region
    _
  $region25: #{loop_forward.1} parent=0 // pred_fallthru
    _

</llo_original>
